<compile_context>
chip_gen: v5e
topology: v5e:2x2
jax: 0.10.0
libtpu: 0.0.40
codegen_flags: <defaults>
</compile_context>

<pallas_src>
import math

import jax
import jax.numpy as jnp
from jax.experimental import pallas as pl
from jax.experimental.pallas import tpu as pltpu

_LANE_CAP = 512                       # lane tile: multiple of 128, 128..512
_MIN_BLOCK_BYTES = 1 * 1024 * 1024    # don't shrink blocks below ~1 MiB


def _sublane_unit(dtype):
    """Sublane quantum: packed sub-32-bit dtypes need taller tiles."""
    itemsize = jnp.dtype(dtype).itemsize
    return {1: 32, 2: 16, 4: 8, 8: 8}.get(itemsize, 8)


def _vmem_budgets():
    """(block budget, scoped-VMEM request) in bytes, with safe fallbacks."""
    try:
        cap = int(pltpu.get_tpu_info().vmem_capacity_bytes)
    except Exception:
        cap = 64 * 1024 * 1024          # conservative (v7x per-TC)
    block_budget = min(max(cap // 4, 8 << 20), 48 << 20)
    vmem_limit = min(max(cap // 2, 32 << 20), 96 << 20)
    return block_budget, vmem_limit


def _round_up(n, m):
    return -(-int(n) // int(m)) * int(m)


def _pick_block(dim, unit, cap):
    """Largest divisor of `dim` that is a multiple of `unit` and <= cap.

    Falls back to any divisor <= cap, then to `dim` itself (full extent is
    always a legal block size).
    """
    dim = int(dim)
    cap = int(max(cap, 1))
    if dim <= cap:
        return dim
    best = None
    k = unit
    while k <= cap:
        if dim % k == 0:
            best = k
        k += unit
    if best is not None:
        return best
    for k in range(cap, 0, -1):
        if dim % k == 0:
            return k
    return dim


def _split_lane_dense(n, sub_unit):
    """Split flattened feature size n into (S, L) with a balanced layout.

    L is a multiple of 128 (<= _LANE_CAP) dividing n; among the candidates
    pick the one whose sublane extent S wastes the least padding against the
    (sub_unit, 128) vreg tile, tie-breaking on larger L.
    """
    n = int(n)
    best_key, best_split = None, None
    lane = 128
    while lane <= min(n, _LANE_CAP):
        if n % lane == 0:
            s = n // lane
            waste = _round_up(s, sub_unit) / s
            key = (waste, -lane)
            if best_key is None or key < best_key:
                best_key, best_split = key, (s, lane)
        lane += 128
    if best_split is None:              # n < 128 (callers pad, so rare)
        return 1, n
    return best_split


def _pick_s_tile(S, sub_unit, block_bytes_per_s, other_steps, block_budget):
    """Sublane tile: fit the VMEM budget, keep the pipeline non-degenerate."""
    # double-buffered in + out blocks per step
    per_s_bytes = 4 * block_bytes_per_s
    cap = max(sub_unit, block_budget // max(per_s_bytes, 1))
    s_tile = _pick_block(S, sub_unit, cap)
    # If the grid would be too short for a pipeline steady state, shrink the
    # tile (but never below ~1 MiB blocks).
    while (other_steps * (S // s_tile) < 8
           and s_tile > sub_unit
           and (s_tile // 2) * block_bytes_per_s >= _MIN_BLOCK_BYTES):
        smaller = _pick_block(S, sub_unit, s_tile // 2)
        if smaller >= s_tile:
            break
        s_tile = smaller
    return s_tile


# ----------------------------------------------------------------------------
# direct encoding: replicate x along a new leading time axis (T copies).
# Input viewed as (B, S, L); output as (T, B, S, L).  Grid = (B, S_tiles, T);
# the input index_map ignores t, so the input block stays resident in VMEM
# across the T output writes.
# ----------------------------------------------------------------------------
def _direct_kernel(x_ref, o_ref):
    # x_ref: (1, s_tile, L)     input tile at (b, s), resident across t
    # o_ref: (1, 1, s_tile, L)  output tile at (t, b, s)
    o_ref[0] = x_ref[...]


def snn_encode_direct(x, time_step=4, materialize=True):
    if not materialize:
        # Zero-copy alternative: let downstream ops fuse the broadcast.
        return jnp.broadcast_to(x[None], (time_step,) + x.shape)

    B = x.shape[0]
    feat_shape = x.shape[1:]
    N = math.prod(feat_shape)
    sub_unit = _sublane_unit(x.dtype)
    block_budget, vmem_limit = _vmem_budgets()

    # Pad the flattened feature dim to a multiple of 128 so tiles stay
    # lane-dense for any input shape.
    N_pad = max(_round_up(N, 128), 128)
    x_flat = x.reshape(B, N)
    if N_pad != N:
        x_flat = jnp.pad(x_flat, ((0, 0), (0, N_pad - N)))

    S, L = _split_lane_dense(N_pad, sub_unit)
    x3 = x_flat.reshape(B, S, L)

    itemsize = jnp.dtype(x.dtype).itemsize
    s_tile = _pick_s_tile(S, sub_unit, L * itemsize,
                          other_steps=B * time_step,
                          block_budget=block_budget)

    out = pl.pallas_call(
        _direct_kernel,
        out_shape=jax.ShapeDtypeStruct((time_step, B, S, L), x.dtype),
        grid_spec=pltpu.PrefetchScalarGridSpec(
            num_scalar_prefetch=0,
            grid=(B, S // s_tile, time_step),
            in_specs=[
                pl.BlockSpec((1, s_tile, L), lambda b, s, t: (b, s, 0)),
            ],
            out_specs=pl.BlockSpec(
                (1, 1, s_tile, L), lambda b, s, t: (t, b, s, 0)
            ),
        ),
        compiler_params=pltpu.CompilerParams(
            dimension_semantics=("parallel", "parallel", "arbitrary"),
            vmem_limit_bytes=vmem_limit,
        ),
    )(x3)

    out = out.reshape(time_step, B, N_pad)
    if N_pad != N:
        out = out[:, :, :N]
    return out.reshape((time_step, B) + feat_shape)


# ----------------------------------------------------------------------------
# dvs encoding: transpose the leading (batch, time) axes of (B, T, 2, H, W).
# Input viewed as (B, T, S, L); output as (T, B, S, L).  Grid = (T, B,
# S_tiles); every DMA is one contiguous (s_tile, L) chunk in both source and
# destination and the body is a single straight copy.
# ----------------------------------------------------------------------------
def _dvs_kernel(x_ref, o_ref):
    # x_ref: (1, 1, s_tile, L)   input tile at (b, t, s)
    # o_ref: (1, 1, s_tile, L)   output tile at (t, b, s)
    o_ref[...] = x_ref[...]


def snn_encode_dvs(x):
    B, T = x.shape[0], x.shape[1]
    feat_shape = x.shape[2:]               # (2, H, W)
    M = math.prod(feat_shape)
    sub_unit = _sublane_unit(x.dtype)
    block_budget, vmem_limit = _vmem_budgets()

    M_pad = max(_round_up(M, 128), 128)
    x_flat = x.reshape(B, T, M)
    if M_pad != M:
        x_flat = jnp.pad(x_flat, ((0, 0), (0, 0), (0, M_pad - M)))

    S, L = _split_lane_dense(M_pad, sub_unit)
    x4 = x_flat.reshape(B, T, S, L)

    itemsize = jnp.dtype(x.dtype).itemsize
    s_tile = _pick_s_tile(S, sub_unit, L * itemsize,
                          other_steps=B * T,
                          block_budget=block_budget)

    out = pl.pallas_call(
        _dvs_kernel,
        out_shape=jax.ShapeDtypeStruct((T, B, S, L), x.dtype),
        grid_spec=pltpu.PrefetchScalarGridSpec(
            num_scalar_prefetch=0,
            grid=(T, B, S // s_tile),
            in_specs=[
                pl.BlockSpec((1, 1, s_tile, L), lambda t, b, s: (b, t, s, 0)),
            ],
            out_specs=pl.BlockSpec(
                (1, 1, s_tile, L), lambda t, b, s: (t, b, s, 0)
            ),
        ),
        compiler_params=pltpu.CompilerParams(
            dimension_semantics=("parallel", "parallel", "arbitrary"),
            vmem_limit_bytes=vmem_limit,
        ),
    )(x4)

    out = out.reshape(T, B, M_pad)
    if M_pad != M:
        out = out[:, :, :M]
    return out.reshape((T, B) + feat_shape)


# ----------------------------------------------------------------------------
# SnnEncoder wrapper mirroring the PyTorch module (no learnable parameters).
# ----------------------------------------------------------------------------
class SnnEncoder:
    def __init__(self, method="direct", time_step=4, materialize=True):
        self.time_step = time_step
        self.method = method
        self.materialize = materialize

    def __call__(self, x):
        if self.method == "direct":
            return snn_encode_direct(x, self.time_step, self.materialize)
        elif self.method == "dvs":
            return snn_encode_dvs(x)
        else:
            raise ValueError(f"unknown method {self.method}")


if __name__ == "__main__":
    key = jax.random.PRNGKey(0)
    k1, k2 = jax.random.split(key)

    # --- direct path: x is (B, C, H, W) like a standard NCHW image batch ---
    B, C, H, W, T = 2, 4, 16, 16, 4
    x = jax.random.normal(k1, (B, C, H, W), dtype=jnp.float32)

    enc_direct = SnnEncoder(method="direct", time_step=T)
    out_direct = jax.block_until_ready(enc_direct(x))
    ref_direct = jnp.stack([x] * T, axis=0)
    assert out_direct.shape == (T, B, C, H, W)
    assert jnp.allclose(out_direct, ref_direct)

    # --- dvs path: x is (b, t, 2, h, w) event-frame batch ---
    xd = jax.random.normal(k2, (B, T, 2, H, W), dtype=jnp.float32)
    enc_dvs = SnnEncoder(method="dvs")
    out_dvs = jax.block_until_ready(enc_dvs(xd))
    ref_dvs = jnp.transpose(xd, (1, 0, 2, 3, 4))
    assert out_dvs.shape == (T, B, 2, H, W)
    assert jnp.allclose(out_dvs, ref_dvs)

    print("KERNEL_OK")
</pallas_src>

<mosaic_0001>
module attributes {stable_mosaic.version = 11 : i64} {
  func.func @_direct_kernel(%arg0: i32, %arg1: i32, %arg2: i32, %arg3: memref<1x8x128xf32, #tpu.memory_space<vmem>>, %arg4: memref<1x1x8x128xf32, #tpu.memory_space<vmem>>) attributes {dimension_semantics = [#tpu.dimension_semantics<parallel>, #tpu.dimension_semantics<parallel>, #tpu.dimension_semantics<arbitrary>], iteration_bounds = array<i64: 2, 1, 4>, scalar_prefetch = 0 : i64, scratch_operands = 0 : i64, tpu.core_type = #tpu.core_type<tc>, window_params = [{transform_indices = @transform_0, window_bounds = array<i64: 1, 8, 128>}, {transform_indices = @transform_1, window_bounds = array<i64: 1, 1, 8, 128>}]} {
    %c0 = arith.constant 0 : index
    %c0_0 = arith.constant 0 : index
    %c0_1 = arith.constant 0 : index
    %0 = vector.load %arg3[%c0, %c0_0, %c0_1] : memref<1x8x128xf32, #tpu.memory_space<vmem>>, vector<1x8x128xf32>
    %c0_2 = arith.constant 0 : index
    %c0_3 = arith.constant 0 : index
    %c0_4 = arith.constant 0 : index
    %c0_5 = arith.constant 0 : index
    %1 = vector.load %arg4[%c0_2, %c0_3, %c0_4, %c0_5] : memref<1x1x8x128xf32, #tpu.memory_space<vmem>>, vector<1x1x8x128xf32>
    %2 = vector.shape_cast %1 : vector<1x1x8x128xf32> to vector<1x8x128xf32>
    %3 = vector.shape_cast %0 : vector<1x8x128xf32> to vector<1x1x8x128xf32>
    tpu.vector_store %arg4[%c0_2, %c0_3, %c0_4, %c0_5], %3 {strides = array<i32>} : memref<1x1x8x128xf32, #tpu.memory_space<vmem>>, vector<1x1x8x128xf32>,
    return
  }
  func.func @transform_0(%arg0: i32, %arg1: i32, %arg2: i32) -> (i32, i32, i32) {
    %c0_i32 = arith.constant 0 : i32
    %c0_i32_0 = arith.constant 0 : i32
    return %arg0, %arg1, %c0_i32 : i32, i32, i32
  }
  func.func @transform_1(%arg0: i32, %arg1: i32, %arg2: i32) -> (i32, i32, i32, i32) {
    %c0_i32 = arith.constant 0 : i32
    %c0_i32_0 = arith.constant 0 : i32
    return %arg2, %arg0, %arg1, %c0_i32 : i32, i32, i32, i32
  }
}

</mosaic_0001>

<llo_original>
// kernel: tpu_custom_call.1
$region0: #{tpu_custom_call.1}
  #allocation0 [shape = 'u32[]', space=smem, size = 0x4, offset = 0x4, fixed_abs, tag = 'smem constant byte address 0x4 - core index']
  #allocation1 [shape = 'u32[72,128]{1,0:T(1,128)}', space=vmem, size = 0x9000, scoped, tag = 'internal scratch']
  %s0 = inlined_call_operand.hbm [shape: f32[2,8,128], index: 0, kind: input, shape index: {}]
  %s1 = inlined_call_operand.hbm [shape: f32[4,2,8,128], index: 1, kind: output, shape index: {}]
  %s2 = sld [smem:[#allocation0]]
  $region41: #{tpu_custom_call.1} parent=0
    _
  %s4 = ssub.s32 1, %s2
  %s5 = scalar_select 0, %s4, %s2
  $region1: #{tpu_custom_call.1} parent=0
    #allocation2 [shape = 'u8[8192]{0}', space=vmem, size = 0x2000, scoped, tag = 'input window, operand 0']
    #allocation3 [shape = 's32[2]{0}', space=sflag, size = 0x8, scoped, tag = 'scoped memory for tpu_custom_call.1']
    #allocation4 [shape = 's32[2]{0}', space=sflag, size = 0x8, scoped, tag = 'scoped memory for tpu_custom_call.1']
    #allocation5 [shape = 'u8[8192]{0}', space=vmem, size = 0x2000, scoped, tag = 'output window, operand 0']
    %6 = vsyncpa [#allocation3], 0
    %s7 = scalar_lea.sflag [#allocation3], 1
    %8 = vsyncpa %s7, 0
    %9 = vsyncpa [#allocation4], 0
    %s10 = scalar_lea.sflag [#allocation4], 1
    %11 = vsyncpa %s10, 0
    loop: start=0, step=1, limit=10
    $region2: #{tpu_custom_call.1} parent=1 // loop_pre_header
      _
    $region3: #{tpu_custom_call.1} parent=1 // loop_header
      %s13 = sphi 0, %s17
      %p14 = scmp.ge.s32.totalorder %s13, 10
      %s20 = sphi 0, %s39
      %s21 = sphi 0, %s35
      %s22 = sphi 0, %s31
      %s23 = sphi 0, %s20
      %s24 = sphi 0, %s21
      %s25 = sphi 0, %s22
      %s26 = sphi 0, %s23
      %s27 = sphi 0, %s24
      %s28 = sphi 0, %s25
      %s44 = sphi 0, %s46
      %s47 = sphi 0, %s44
      %s48 = sphi 0, %s47
      %s64 = sphi 0, %s48
      %s74 = sphi 0, %s76
      %s77 = sphi 0, %s74
      %s78 = sphi 0, %s77
      %s94 = sphi 0, %s78
    $region4: #{tpu_custom_call.1} parent=1 // loop_header_branch
      %16 = sbr.rel (%p14) target = $region8
    $region5: #{tpu_custom_call.1} parent=1 // loop_body
      %s18 = ssub.s32 %s13, 1
      %s19 = ssub.s32 %s13, 2
      %s29 = sadd.s32 1, %s22
      %p30 = scmp.ge.s32.totalorder %s29, 4
      %s31 = scalar_select %p30, 0, %s29
      %s32 = sadd.s32 1, %s21
      %s33 = scalar_select %p30, %s32, %s21
      %p34 = scmp.ge.s32.totalorder %s33, 1
      %s35 = scalar_select %p34, 0, %s33
      %s36 = sadd.s32 1, %s20
      %s37 = scalar_select %p34, %s36, %s20
      %p38 = scmp.ge.s32.totalorder %s37, 2
      %s39 = scalar_select %p38, 0, %s37
      %s40 = ssub.s32 %s20, %s39
      %s41 = ssub.s32 %s21, %s35
      %s42 = sor.u32 %s40, %s41
      %p43 = scmp.eq.s32.totalorder %s42, 0
      %s45 = sadd.s32 %s44, 1
      %s46 = scalar_select %p43, %s44, %s45
      %p49 = pneg %p43
      %p50 = scmp.eq.s32.totalorder %s13, 7
      %p51 = por %p49, %p50
      %p52 = scmp.ne.s32.totalorder %s44, %s47
      %p53 = scmp.eq.s32.totalorder %s13, 0
      %p54 = por %p52, %p53
      %p55 = scmp.ne.s32.totalorder %s44, %s47
      %p56 = scmp.eq.s32.totalorder %s18, 7
      %p57 = por %p55, %p56
      %p58 = scmp.ne.s32.totalorder %s47, %s48
      %p59 = scmp.eq.s32.totalorder %s18, 0
      %p60 = por %p58, %p59
      %p61 = scmp.ne.s32.totalorder %s47, %s48
      %p62 = scmp.eq.s32.totalorder %s19, 7
      %p63 = por %p61, %p62
      %p65 = scmp.ne.s32.totalorder %s48, %s64
      %p66 = scmp.eq.s32.totalorder %s19, 0
      %p67 = por %p65, %p66
      %s68 = ssub.s32 %s22, %s31
      %s69 = ssub.s32 %s20, %s39
      %s70 = sor.u32 %s68, %s69
      %s71 = ssub.s32 %s21, %s35
      %s72 = sor.u32 %s70, %s71
      %p73 = scmp.eq.s32.totalorder %s72, 0
      %s75 = sadd.s32 %s74, 1
      %s76 = scalar_select %p73, %s74, %s75
      %p79 = pneg %p73
      %p80 = scmp.eq.s32.totalorder %s13, 7
      %p81 = por %p79, %p80
      %p82 = scmp.ne.s32.totalorder %s74, %s77
      %p83 = scmp.eq.s32.totalorder %s13, 0
      %p84 = por %p82, %p83
      %p85 = scmp.ne.s32.totalorder %s74, %s77
      %p86 = scmp.eq.s32.totalorder %s18, 7
      %p87 = por %p85, %p86
      %p88 = scmp.ne.s32.totalorder %s77, %s78
      %p89 = scmp.eq.s32.totalorder %s18, 0
      %p90 = por %p88, %p89
      %p91 = scmp.ne.s32.totalorder %s77, %s78
      %p92 = scmp.eq.s32.totalorder %s19, 7
      %p93 = por %p91, %p92
      %p95 = scmp.ne.s32.totalorder %s78, %s94
      %p96 = scmp.eq.s32.totalorder %s19, 0
      %p97 = por %p95, %p96
      %p98 = scmp.le.s32.totalorder 1, %s13
      %p99 = scmp.lt.s32.totalorder %s13, 9
      %p100 = pnand %p98, %p99
      %p101 = pneg %p100
      // Predicated region
      $region9: #{tpu_custom_call.1} parent=5 // pred_check
        _
      $region10: #{tpu_custom_call.1} parent=5 // pred_check_branch
        %103 = sbr.rel (%p100) target = $region12
      $region11: #{tpu_custom_call.1} parent=5 // pred_region
        %s104 = ssub.s32 %s13, 1
      $region12: #{tpu_custom_call.1} parent=5 // pred_fallthru
        _
      %p105 = scmp.lt.s32.totalorder %s13, 8
      // Predicated region
      $region13: #{tpu_custom_call.1} parent=5 // pred_check
        %p106 = pneg %p105
      $region14: #{tpu_custom_call.1} parent=5 // pred_check_branch
        %108 = sbr.rel (%p106) target = $region16
      $region15: #{tpu_custom_call.1} parent=5 // pred_region
        // Predicated region
        $region17: #{tpu_custom_call.1} parent=15 // pred_check
          %p109 = pneg %p54
        $region18: #{tpu_custom_call.1} parent=15 // pred_check_branch
          %111 = sbr.rel (%p109) target = $region20
        $region19: #{tpu_custom_call.1} parent=15 // pred_region
          %s112 = sand.u32 %s44, 1
          %s113 = scalar_lea.sflag [#allocation3], %s112
          %s114 = sand.u32 %s44, 1
          %s115 = smul.addr %s114, 8
          %s116 = scalar_lea.vmem [#allocation2], %s115
          %118 = vsyncadd %s113, 0
          %s119 = sadd.s32 %s21, %s20
          %s120 = smul.addr %s119, 8
          %s121 = scalar_lea.hbm %s0, %s120
          %s123 = sshll.u32 %s121, 4
          %s124 = int_to_ptr.hbm [resolvable:$true] %s123
          %s125 = sshll.u32 %s116, 4
          %s126 = int_to_ptr.vmem [resolvable:$true] %s125
          %128 = dma.hbm_to_vmem [thread:$0]  %s124, 128, %s126, %s113
        $region20: #{tpu_custom_call.1} parent=15 // pred_fallthru
          _
      $region16: #{tpu_custom_call.1} parent=5 // pred_fallthru
        _
      %p129 = scmp.le.s32.totalorder 1, %s13
      %p130 = scmp.lt.s32.totalorder %s13, 9
      %p131 = pnand %p129, %p130
      %p132 = pneg %p131
      // Predicated region
      $region21: #{tpu_custom_call.1} parent=5 // pred_check
        _
      $region22: #{tpu_custom_call.1} parent=5 // pred_check_branch
        %134 = sbr.rel (%p131) target = $region24
      $region23: #{tpu_custom_call.1} parent=5 // pred_region
        %s135 = ssub.s32 %s13, 1
        %s136 = sand.u32 %s47, 1
        %s137 = scalar_lea.sflag [#allocation3], %s136
        %s138 = sand.u32 %s47, 1
        %s139 = smul.addr %s138, 8
        %s140 = scalar_lea.vmem [#allocation2], %s139
        // Predicated region
        $region25: #{tpu_custom_call.1} parent=23 // pred_check
          %p141 = pneg %p60
        $region26: #{tpu_custom_call.1} parent=23 // pred_check_branch
          %143 = sbr.rel (%p141) target = $region28
        $region27: #{tpu_custom_call.1} parent=23 // pred_region
          %145 = dma.done %s137, 128
        $region28: #{tpu_custom_call.1} parent=23 // pred_fallthru
          _
        %s146 = sand.u32 %s47, 1
        %s147 = scalar_lea.sflag [#allocation3], %s146
        %s148 = sand.u32 %s47, 1
        %s149 = smul.addr %s148, 8
        %s150 = scalar_lea.vmem [#allocation2], %s149
        %p151 = pneg %p60
        %p152 = pneg %p57
        %p153 = pneg %p90
        %p154 = pneg %p87
        %s155 = sand.u32 %s77, 1
        %s156 = scalar_lea.sflag [#allocation4], %s155
        %s157 = sand.u32 %s77, 1
        %s158 = smul.addr %s157, 8
        %s159 = scalar_lea.vmem [#allocation5], %s158
        %v160 = vld [vmem:[%s140] sm:$0xff]
        %161 = vst [vmem:[%s159] sm:$0xff] %v160
        %s162 = sand.u32 %s77, 1
        %s163 = scalar_lea.sflag [#allocation4], %s162
        %s164 = sand.u32 %s77, 1
        %s165 = smul.addr %s164, 8
        %s166 = scalar_lea.vmem [#allocation5], %s165
        // Predicated region
        $region29: #{tpu_custom_call.1} parent=23 // pred_check
          %p167 = pneg %p87
        $region30: #{tpu_custom_call.1} parent=23 // pred_check_branch
          %169 = sbr.rel (%p167) target = $region32
        $region31: #{tpu_custom_call.1} parent=23 // pred_region
          %171 = vsyncadd %s163, 0
          %s172 = sadd.s32 %s24, %s23
          %s173 = smul.addr %s25, 2
          %s174 = sadd.s32 %s172, %s173
          %s175 = smul.addr %s174, 8
          %s176 = scalar_lea.hbm %s1, %s175
          %s178 = sshll.u32 %s166, 4
          %s179 = int_to_ptr.vmem [resolvable:$true] %s178
          %s180 = sshll.u32 %s176, 4
          %s181 = int_to_ptr.hbm [resolvable:$true] %s180
          %183 = dma.vmem_to_hbm [thread:$0]  %s179, 128, %s181, %s163
        $region32: #{tpu_custom_call.1} parent=23 // pred_fallthru
          _
      $region24: #{tpu_custom_call.1} parent=5 // pred_fallthru
        _
      %p184 = scmp.le.s32.totalorder 2, %s13
      // Predicated region
      $region33: #{tpu_custom_call.1} parent=5 // pred_check
        %p185 = pneg %p184
      $region34: #{tpu_custom_call.1} parent=5 // pred_check_branch
        %187 = sbr.rel (%p185) target = $region36
      $region35: #{tpu_custom_call.1} parent=5 // pred_region
        %s188 = ssub.s32 %s13, 2
        // Predicated region
        $region37: #{tpu_custom_call.1} parent=35 // pred_check
          %p189 = pneg %p93
        $region38: #{tpu_custom_call.1} parent=35 // pred_check_branch
          %191 = sbr.rel (%p189) target = $region40
        $region39: #{tpu_custom_call.1} parent=35 // pred_region
          %s192 = sand.u32 %s78, 1
          %s193 = scalar_lea.sflag [#allocation4], %s192
          %s194 = sand.u32 %s78, 1
          %s195 = smul.addr %s194, 8
          %s196 = scalar_lea.vmem [#allocation5], %s195
          %198 = dma.done %s193, 128
        $region40: #{tpu_custom_call.1} parent=35 // pred_fallthru
          _
      $region36: #{tpu_custom_call.1} parent=5 // pred_fallthru
        _
    $region6: #{tpu_custom_call.1} parent=1 // loop_footer
      %s17 = sadd.s32 1, %s13
    $region7: #{tpu_custom_call.1} parent=1 // loop_footer_branch
      %12 = sbr.rel target = $region3
    $region8: #{tpu_custom_call.1} parent=1 // loop_exit
      _
    %199 = vsyncpa [#allocation3], 1
    %s200 = scalar_lea.sflag [#allocation3], 1
    %201 = vsyncpa %s200, 1
    %202 = vsyncpa [#allocation4], 1
    %s203 = scalar_lea.sflag [#allocation4], 1
    %204 = vsyncpa %s203, 1

</llo_original>
